<compile_context>
chip_gen: v6e
topology: v6e:2x2x1
jax: 0.10.0
libtpu: 0.0.40
codegen_flags: <defaults>
</compile_context>

<pallas_src>
import jax
import jax.numpy as jnp
from jax.experimental import pallas as pl
from jax.experimental.pallas import tpu as pltpu

BN_EPS = 1e-3    # scvi uses nn.BatchNorm1d(..., eps=0.001)
VAR_EPS = 1e-4   # q_v = exp(var_encoder(q)) + 1e-4


def _round_up(x, m):
    return (x + m - 1) // m * m


def _vmem_estimate(tile_b, G, H, L, small_w):
    """Rough VMEM bytes for one tile (weights + double-buffered tiles + temps)."""
    weights = (G * 2 * H * 2 + 2 * H * (2 * L + 2) * 4 + (2 * L + 2) * 4
               + L * H * 4 + H * 2 * G * 2 + 2 * G * 4)
    tile_in = tile_b * (G * 2 + 2 * H * 4 + H * 4 + L * 4 + 4)
    tile_out = tile_b * (3 * G + small_w) * 4
    interm = tile_b * (2 * H + 2 * G + 2 * G) * 4
    return weights + 2 * (tile_in + tile_out) + interm


def _vae_kernel(
    # batch-tiled inputs
    x_ref, cov_enc_ref, cov_d_ref, eps_z_ref, eps_l_ref,
    # resident (BN-folded, fused) weights
    w_enc_ref, w_zl_ref, b_zl_ref, w_dz_ref, w_dh_ref, b_dh_ref,
    # outputs
    px_scale_ref, px_rate_ref, px_dropout_ref, small_ref,
):
    f32 = jnp.float32
    bf16 = jnp.bfloat16
    L = eps_z_ref.shape[1]
    G = px_scale_ref.shape[1]

    # log_variational (f32 math, bf16 MXU operand)
    x_ = jnp.log1p(x_ref[...].astype(f32)).astype(bf16)

    # Fused z/l encoder hidden layer.  BN(eval) is folded into w_enc; the bias and
    # the gathered batch-covariate row arrive as cov_enc.
    h = jnp.dot(x_, w_enc_ref[...], preferred_element_type=f32) + cov_enc_ref[...]
    h = jnp.maximum(h, 0.0)                                     # (TB, 2H) f32

    # Fused mean/var heads of both encoders (block-diagonal weight, N = 2L+2).
    head = jnp.dot(h, w_zl_ref[...], preferred_element_type=f32) + b_zl_ref[...]
    qz_m = head[:, 0:L]
    qz_v = jnp.exp(head[:, L:2 * L]) + VAR_EPS
    ql_m = head[:, 2 * L:2 * L + 1]
    ql_v = jnp.exp(head[:, 2 * L + 1:2 * L + 2]) + VAR_EPS
    z = qz_m + jnp.sqrt(qz_v) * eps_z_ref[...]                  # reparameterized
    library = ql_m + jnp.sqrt(ql_v) * eps_l_ref[...]

    # Decoder hidden layer (BN folded; bias + covariate in cov_d).
    hd = jnp.dot(z, w_dz_ref[...], preferred_element_type=f32) + cov_d_ref[...]
    hd = jnp.maximum(hd, 0.0).astype(bf16)

    # Fused scale/dropout decoder head: one (H, 2G) bf16 matmul, f32 accumulation.
    full = jnp.dot(hd, w_dh_ref[...], preferred_element_type=f32) + b_dh_ref[...]
    logits = full[:, :G]
    px_dropout = full[:, G:]

    m = jnp.max(logits, axis=-1, keepdims=True)
    e = jnp.exp(logits - m)
    px_scale = e / jnp.sum(e, axis=-1, keepdims=True)           # softmax over genes
    px_rate = jnp.exp(library) * px_scale

    px_scale_ref[...] = px_scale
    px_rate_ref[...] = px_rate
    px_dropout_ref[...] = px_dropout

    # Pack the six narrow outputs into one lane-dense 128-wide slab (one dense DMA
    # to HBM instead of six narrow strided writes).
    small_ref[...] = jnp.zeros(small_ref.shape, f32)
    small_ref[:, 0:L] = qz_m
    small_ref[:, L:2 * L] = qz_v
    small_ref[:, 2 * L:3 * L] = z
    small_ref[:, 3 * L:3 * L + 1] = ql_m
    small_ref[:, 3 * L + 1:3 * L + 2] = ql_v
    small_ref[:, 3 * L + 2:3 * L + 3] = library


def _fold_bn(w_x, w_c, b, bn):
    """Fold eval-mode BatchNorm1d into the preceding Linear.  bn rows: g, b, mean, var."""
    gamma, beta, mean, var = bn[0], bn[1], bn[2], bn[3]
    s = gamma * jax.lax.rsqrt(var + BN_EPS)
    t = beta - mean * s
    return w_x * s[None, :], w_c * s[None, :], b[0] * s + t


def vae_forward(x, batch_index, params, eps_z, eps_l, *, tile_b=None):
    """Full VAE forward: batch-tiled Pallas kernel + cheap wrapper-side gathers."""
    B, G = x.shape
    H = params["wz_x"].shape[1]
    L = params["wz_m"].shape[1]
    f32, bf16 = jnp.float32, jnp.bfloat16

    # ---- fold eval BatchNorm into the first Linear of each FCLayers block --------
    wzx, wzc, bz = _fold_bn(params["wz_x"], params["wz_c"], params["bz_0"], params["bn_z"])
    wlx, wlc, bl = _fold_bn(params["wl_x"], params["wl_c"], params["bl_0"], params["bn_l"])
    wdz, wdc, bd = _fold_bn(params["wd_z"], params["wd_c"], params["bd_0"], params["bn_d"])

    # ---- one-hot(batch) matmuls -> per-row gathers, folded with the bias ---------
    cov_enc = jnp.concatenate([wzc[batch_index] + bz[None, :],
                               wlc[batch_index] + bl[None, :]], axis=1).astype(f32)  # (B, 2H)
    cov_d = (wdc[batch_index] + bd[None, :]).astype(f32)                              # (B, H)

    # ---- fuse the matmuls ---------------------------------------------------------
    w_enc = jnp.concatenate([wzx, wlx], axis=1).astype(bf16)                          # (G, 2H)
    w_zl = jnp.concatenate(
        [jnp.concatenate([params["wz_m"], params["wz_v"], jnp.zeros((H, 2), f32)], axis=1),
         jnp.concatenate([jnp.zeros((H, 2 * L), f32), params["wl_m"], params["wl_v"]], axis=1)],
        axis=0).astype(f32)                                                           # (2H, 2L+2)
    b_zl = jnp.concatenate([params["bz_m"], params["bz_v"],
                            params["bl_m"], params["bl_v"]], axis=1).astype(f32)      # (1, 2L+2)
    w_dh = jnp.concatenate([params["wd_s"], params["wd_p"]], axis=1).astype(bf16)     # (H, 2G)
    b_dh = jnp.concatenate([params["bd_s"], params["bd_p"]], axis=1).astype(f32)      # (1, 2G)
    w_dz = wdz.astype(f32)                                                            # (L, H)

    # gene-batch dispersion: pure gather + exp -> computed outside the kernel.
    px_r = jnp.exp(params["px_r"][batch_index].astype(f32))                           # (B, G)

    small_w = _round_up(3 * L + 3, 128)

    # ---- batch tiling: largest tile fitting a conservative (v7x-safe) VMEM budget -
    if tile_b is None:
        tile_b = 256
        while tile_b > 8 and _vmem_estimate(tile_b, G, H, L, small_w) > 40 * 2**20:
            tile_b //= 2
    tile_b = max(8, min(tile_b, _round_up(B, 8)))
    b_pad = _round_up(B, tile_b)

    def pad_b(a):
        return jnp.pad(a, ((0, b_pad - B), (0, 0))) if b_pad != B else a

    x_bf = pad_b(x.astype(bf16))            # count data: small ints are exact in bf16
    cov_enc_p = pad_b(cov_enc)
    cov_d_p = pad_b(cov_d)
    eps_z_p = pad_b(eps_z.astype(f32))
    eps_l_p = pad_b(eps_l.astype(f32))

    grid = (b_pad // tile_b,)
    row = lambda i: (i, 0)
    rep = lambda i: (0, 0)

    in_specs = [
        pl.BlockSpec((tile_b, G), row),           # x
        pl.BlockSpec((tile_b, 2 * H), row),       # cov_enc
        pl.BlockSpec((tile_b, H), row),           # cov_d
        pl.BlockSpec((tile_b, L), row),           # eps_z
        pl.BlockSpec((tile_b, 1), row),           # eps_l
        pl.BlockSpec((G, 2 * H), rep),            # w_enc   (resident)
        pl.BlockSpec((2 * H, 2 * L + 2), rep),    # w_zl    (resident)
        pl.BlockSpec((1, 2 * L + 2), rep),        # b_zl    (resident)
        pl.BlockSpec((L, H), rep),                # w_dz    (resident)
        pl.BlockSpec((H, 2 * G), rep),            # w_dh    (resident)
        pl.BlockSpec((1, 2 * G), rep),            # b_dh    (resident)
    ]
    out_specs = (
        pl.BlockSpec((tile_b, G), row),           # px_scale
        pl.BlockSpec((tile_b, G), row),           # px_rate
        pl.BlockSpec((tile_b, G), row),           # px_dropout
        pl.BlockSpec((tile_b, small_w), row),     # packed [qz_m|qz_v|z|ql_m|ql_v|lib]
    )
    out_shapes = (
        jax.ShapeDtypeStruct((b_pad, G), f32),
        jax.ShapeDtypeStruct((b_pad, G), f32),
        jax.ShapeDtypeStruct((b_pad, G), f32),
        jax.ShapeDtypeStruct((b_pad, small_w), f32),
    )

    est = _vmem_estimate(tile_b, G, H, L, small_w)
    vmem_limit = int(min(max(2 * est, 16 * 2**20), 64 * 2**20))
    flops = 2 * b_pad * (G * 2 * H + 2 * H * (2 * L + 2) + L * H + H * 2 * G)
    bytes_accessed = int(
        x_bf.size * 2 + cov_enc_p.size * 4 + cov_d_p.size * 4
        + eps_z_p.size * 4 + eps_l_p.size * 4
        + w_enc.size * 2 + w_zl.size * 4 + b_zl.size * 4
        + w_dz.size * 4 + w_dh.size * 2 + b_dh.size * 4
        + b_pad * (3 * G + small_w) * 4)
    transcendentals = int(b_pad * (2 * G + 2 * L + 4))

    outs = pl.pallas_call(
        _vae_kernel,
        out_shape=out_shapes,
        grid=grid,
        in_specs=in_specs,
        out_specs=out_specs,
        compiler_params=pltpu.CompilerParams(
            dimension_semantics=("parallel",),
            vmem_limit_bytes=vmem_limit),
        cost_estimate=pl.CostEstimate(
            flops=flops, transcendentals=transcendentals,
            bytes_accessed=bytes_accessed),
    )(x_bf, cov_enc_p, cov_d_p, eps_z_p, eps_l_p,
      w_enc, w_zl, b_zl, w_dz, w_dh, b_dh)

    px_scale, px_rate, px_dropout, small = outs
    px_scale, px_rate, px_dropout, small = (
        px_scale[:B], px_rate[:B], px_dropout[:B], small[:B])

    return dict(
        px_scale=px_scale, px_r=px_r, px_rate=px_rate, px_dropout=px_dropout,
        qz_m=small[:, 0:L], qz_v=small[:, L:2 * L], z=small[:, 2 * L:3 * L],
        ql_m=small[:, 3 * L:3 * L + 1], ql_v=small[:, 3 * L + 1:3 * L + 2],
        library=small[:, 3 * L + 2:3 * L + 3])


def init_params(key, n_input, n_batch, n_hidden, n_latent):
    """Deterministic synthetic parameter init (shapes follow the PyTorch module)."""
    ks = iter(jax.random.split(key, 32))
    nrm = lambda shp, s=0.05: (s * jax.random.normal(next(ks), shp)).astype(jnp.float32)
    zeros = lambda shp: jnp.zeros(shp, jnp.float32)
    bn_init = lambda h: jnp.stack(  # gamma, beta, running_mean, running_var
        [jnp.ones((h,)), jnp.zeros((h,)), jnp.zeros((h,)), jnp.ones((h,))]
    ).astype(jnp.float32)

    G, NB, H, L = n_input, n_batch, n_hidden, n_latent
    return dict(
        # z encoder: Linear(G + NB, H) split into gene / covariate parts
        wz_x=nrm((G, H)), wz_c=nrm((NB, H)), bz_0=zeros((1, H)), bn_z=bn_init(H),
        wz_m=nrm((H, L)), bz_m=zeros((1, L)),
        wz_v=nrm((H, L)), bz_v=zeros((1, L)),
        # l encoder
        wl_x=nrm((G, H)), wl_c=nrm((NB, H)), bl_0=zeros((1, H)), bn_l=bn_init(H),
        wl_m=nrm((H, 1)), bl_m=zeros((1, 1)),
        wl_v=nrm((H, 1)), bl_v=zeros((1, 1)),
        # decoder
        wd_z=nrm((L, H)), wd_c=nrm((NB, H)), bd_0=zeros((1, H)), bn_d=bn_init(H),
        wd_s=nrm((H, G)), bd_s=zeros((1, G)),
        wd_p=nrm((H, G)), bd_p=zeros((1, G)),
        # dispersion (gene-batch): torch param is (n_input, n_batch); stored transposed
        px_r=nrm((NB, G), 1.0),
    )


if __name__ == "__main__":
    B, G, NB, H, L = 8, 128, 3, 32, 10   # batch, n_input, n_batch, n_hidden, n_latent

    key = jax.random.PRNGKey(0)
    k_x, k_b, k_ez, k_el, k_p = jax.random.split(key, 5)

    x = jnp.round(jax.random.uniform(k_x, (B, G), minval=0.0, maxval=50.0))  # count-like
    batch_index = jax.random.randint(k_b, (B,), 0, NB)
    eps_z = jax.random.normal(k_ez, (B, L), dtype=jnp.float32)
    eps_l = jax.random.normal(k_el, (B, 1), dtype=jnp.float32)
    params = init_params(k_p, G, NB, H, L)

    out = vae_forward(x, batch_index, params, eps_z, eps_l)
    jax.block_until_ready(out)

    assert out["px_scale"].shape == (B, G)
    assert out["px_rate"].shape == (B, G)
    assert out["px_r"].shape == (B, G)
    assert out["px_dropout"].shape == (B, G)
    assert out["qz_m"].shape == (B, L) and out["z"].shape == (B, L)
    assert out["ql_m"].shape == (B, 1) and out["library"].shape == (B, 1)
    assert bool(jnp.all(jnp.isfinite(out["px_rate"])))
    assert bool(jnp.all(out["qz_v"] > 0)) and bool(jnp.all(out["ql_v"] > 0))
    # softmax rows sum to 1
    assert bool(jnp.allclose(out["px_scale"].sum(-1), 1.0, atol=1e-4))

    print("KERNEL_OK")
</pallas_src>

<mosaic_0001>
module attributes {stable_mosaic.version = 11 : i64} {
  func.func @_vae_kernel(%arg0: i32, %arg1: memref<8x128xbf16, #tpu.memory_space<vmem>>, %arg2: memref<8x64xf32, #tpu.memory_space<vmem>>, %arg3: memref<8x32xf32, #tpu.memory_space<vmem>>, %arg4: memref<8x10xf32, #tpu.memory_space<vmem>>, %arg5: memref<8x1xf32, #tpu.memory_space<vmem>>, %arg6: memref<128x64xbf16, #tpu.memory_space<vmem>>, %arg7: memref<64x22xf32, #tpu.memory_space<vmem>>, %arg8: memref<1x22xf32, #tpu.memory_space<vmem>>, %arg9: memref<10x32xf32, #tpu.memory_space<vmem>>, %arg10: memref<32x256xbf16, #tpu.memory_space<vmem>>, %arg11: memref<1x256xf32, #tpu.memory_space<vmem>>, %arg12: memref<8x128xf32, #tpu.memory_space<vmem>>, %arg13: memref<8x128xf32, #tpu.memory_space<vmem>>, %arg14: memref<8x128xf32, #tpu.memory_space<vmem>>, %arg15: memref<8x128xf32, #tpu.memory_space<vmem>>) attributes {dimension_semantics = [#tpu.dimension_semantics<parallel>], iteration_bounds = array<i64: 1>, scalar_prefetch = 0 : i64, scratch_operands = 0 : i64, tpu.core_type = #tpu.core_type<tc>, window_params = [{transform_indices = @transform_0, window_bounds = array<i64: 8, 128>}, {transform_indices = @transform_1, window_bounds = array<i64: 8, 64>}, {transform_indices = @transform_2, window_bounds = array<i64: 8, 32>}, {transform_indices = @transform_3, window_bounds = array<i64: 8, 10>}, {transform_indices = @transform_4, window_bounds = array<i64: 8, 1>}, {pipeline_mode = #tpu.pipeline_mode<synchronous>, transform_indices = @transform_5, window_bounds = array<i64: 128, 64>}, {pipeline_mode = #tpu.pipeline_mode<synchronous>, transform_indices = @transform_6, window_bounds = array<i64: 64, 22>}, {pipeline_mode = #tpu.pipeline_mode<synchronous>, transform_indices = @transform_7, window_bounds = array<i64: 1, 22>}, {pipeline_mode = #tpu.pipeline_mode<synchronous>, transform_indices = @transform_8, window_bounds = array<i64: 10, 32>}, {pipeline_mode = #tpu.pipeline_mode<synchronous>, transform_indices = @transform_9, window_bounds = array<i64: 32, 256>}, {pipeline_mode = #tpu.pipeline_mode<synchronous>, transform_indices = @transform_10, window_bounds = array<i64: 1, 256>}, {transform_indices = @transform_11, window_bounds = array<i64: 8, 128>}, {transform_indices = @transform_12, window_bounds = array<i64: 8, 128>}, {transform_indices = @transform_13, window_bounds = array<i64: 8, 128>}, {transform_indices = @transform_14, window_bounds = array<i64: 8, 128>}]} {
    %c0 = arith.constant 0 : index
    %c0_0 = arith.constant 0 : index
    %0 = vector.load %arg1[%c0, %c0_0] : memref<8x128xbf16, #tpu.memory_space<vmem>>, vector<8x128xbf16>
    %1 = arith.extf %0 : vector<8x128xbf16> to vector<8x128xf32>
    %2 = math.log1p %1 : vector<8x128xf32>
    %3 = arith.truncf %2 : vector<8x128xf32> to vector<8x128xbf16>
    %c0_1 = arith.constant 0 : index
    %c0_2 = arith.constant 0 : index
    %4 = vector.load %arg6[%c0_1, %c0_2] : memref<128x64xbf16, #tpu.memory_space<vmem>>, vector<128x64xbf16>
    %cst = arith.constant dense<0.000000e+00> : vector<8x64xf32>
    %5 = tpu.matmul %3, %4, %cst {dimension_numbers = #tpu.dot_dimension_numbers<[1], [0], [0], [1], [0, 0, 1, 1], [], []>} : vector<8x128xbf16>, vector<128x64xbf16>, vector<8x64xf32> -> vector<8x64xf32>
    %c0_3 = arith.constant 0 : index
    %c0_4 = arith.constant 0 : index
    %6 = vector.load %arg2[%c0_3, %c0_4] : memref<8x64xf32, #tpu.memory_space<vmem>>, vector<8x64xf32>
    %7 = arith.addf %5, %6 : vector<8x64xf32>
    %cst_5 = arith.constant 0.000000e+00 : f32
    %8 = vector.broadcast %cst_5 : f32 to vector<8x64xf32>
    %9 = arith.maximumf %7, %8 : vector<8x64xf32>
    %c0_6 = arith.constant 0 : index
    %c0_7 = arith.constant 0 : index
    %10 = vector.load %arg7[%c0_6, %c0_7] : memref<64x22xf32, #tpu.memory_space<vmem>>, vector<64x22xf32>
    %cst_8 = arith.constant dense<0.000000e+00> : vector<8x22xf32>
    %11 = tpu.matmul %9, %10, %cst_8 {dimension_numbers = #tpu.dot_dimension_numbers<[1], [0], [0], [1], [0, 0, 1, 1], [], []>} : vector<8x64xf32>, vector<64x22xf32>, vector<8x22xf32> -> vector<8x22xf32>
    %c0_9 = arith.constant 0 : index
    %c0_10 = arith.constant 0 : index
    %12 = vector.load %arg8[%c0_9, %c0_10] : memref<1x22xf32, #tpu.memory_space<vmem>>, vector<1x22xf32>
    %13 = vector.broadcast %12 : vector<1x22xf32> to vector<8x22xf32>
    %14 = arith.addf %11, %13 : vector<8x22xf32>
    %15 = vector.extract_strided_slice %14 {offsets = [0, 0], sizes = [8, 10], strides = [1, 1]} : vector<8x22xf32> to vector<8x10xf32>
    %16 = vector.extract_strided_slice %14 {offsets = [0, 10], sizes = [8, 10], strides = [1, 1]} : vector<8x22xf32> to vector<8x10xf32>
    %17 = math.exp %16 : vector<8x10xf32>
    %cst_11 = arith.constant 9.99999974E-5 : f32
    %18 = vector.broadcast %cst_11 : f32 to vector<8x10xf32>
    %19 = arith.addf %17, %18 : vector<8x10xf32>
    %20 = vector.extract_strided_slice %14 {offsets = [0, 20], sizes = [8, 1], strides = [1, 1]} : vector<8x22xf32> to vector<8x1xf32>
    %21 = vector.extract_strided_slice %14 {offsets = [0, 21], sizes = [8, 1], strides = [1, 1]} : vector<8x22xf32> to vector<8x1xf32>
    %22 = math.exp %21 : vector<8x1xf32>
    %cst_12 = arith.constant 9.99999974E-5 : f32
    %23 = vector.broadcast %cst_12 : f32 to vector<8x1xf32>
    %24 = arith.addf %22, %23 : vector<8x1xf32>
    %25 = math.sqrt %19 : vector<8x10xf32>
    %c0_13 = arith.constant 0 : index
    %c0_14 = arith.constant 0 : index
    %26 = vector.load %arg4[%c0_13, %c0_14] : memref<8x10xf32, #tpu.memory_space<vmem>>, vector<8x10xf32>
    %27 = arith.mulf %25, %26 : vector<8x10xf32>
    %28 = arith.addf %15, %27 : vector<8x10xf32>
    %29 = math.sqrt %24 : vector<8x1xf32>
    %c0_15 = arith.constant 0 : index
    %c0_16 = arith.constant 0 : index
    %30 = vector.load %arg5[%c0_15, %c0_16] : memref<8x1xf32, #tpu.memory_space<vmem>>, vector<8x1xf32>
    %31 = arith.mulf %29, %30 : vector<8x1xf32>
    %32 = arith.addf %20, %31 : vector<8x1xf32>
    %c0_17 = arith.constant 0 : index
    %c0_18 = arith.constant 0 : index
    %33 = vector.load %arg9[%c0_17, %c0_18] : memref<10x32xf32, #tpu.memory_space<vmem>>, vector<10x32xf32>
    %cst_19 = arith.constant dense<0.000000e+00> : vector<8x32xf32>
    %34 = tpu.matmul %28, %33, %cst_19 {dimension_numbers = #tpu.dot_dimension_numbers<[1], [0], [0], [1], [0, 0, 1, 1], [], []>} : vector<8x10xf32>, vector<10x32xf32>, vector<8x32xf32> -> vector<8x32xf32>
    %c0_20 = arith.constant 0 : index
    %c0_21 = arith.constant 0 : index
    %35 = vector.load %arg3[%c0_20, %c0_21] : memref<8x32xf32, #tpu.memory_space<vmem>>, vector<8x32xf32>
    %36 = arith.addf %34, %35 : vector<8x32xf32>
    %cst_22 = arith.constant 0.000000e+00 : f32
    %37 = vector.broadcast %cst_22 : f32 to vector<8x32xf32>
    %38 = arith.maximumf %36, %37 : vector<8x32xf32>
    %39 = arith.truncf %38 : vector<8x32xf32> to vector<8x32xbf16>
    %c0_23 = arith.constant 0 : index
    %c0_24 = arith.constant 0 : index
    %40 = vector.load %arg10[%c0_23, %c0_24] : memref<32x256xbf16, #tpu.memory_space<vmem>>, vector<32x256xbf16>
    %cst_25 = arith.constant dense<0.000000e+00> : vector<8x256xf32>
    %41 = tpu.matmul %39, %40, %cst_25 {dimension_numbers = #tpu.dot_dimension_numbers<[1], [0], [0], [1], [0, 0, 1, 1], [], []>} : vector<8x32xbf16>, vector<32x256xbf16>, vector<8x256xf32> -> vector<8x256xf32>
    %c0_26 = arith.constant 0 : index
    %c0_27 = arith.constant 0 : index
    %42 = vector.load %arg11[%c0_26, %c0_27] : memref<1x256xf32, #tpu.memory_space<vmem>>, vector<1x256xf32>
    %43 = vector.broadcast %42 : vector<1x256xf32> to vector<8x256xf32>
    %44 = arith.addf %41, %43 : vector<8x256xf32>
    %45 = vector.extract_strided_slice %44 {offsets = [0, 0], sizes = [8, 128], strides = [1, 1]} : vector<8x256xf32> to vector<8x128xf32>
    %46 = vector.extract_strided_slice %44 {offsets = [0, 128], sizes = [8, 128], strides = [1, 1]} : vector<8x256xf32> to vector<8x128xf32>
    %cst_28 = arith.constant dense<0xFF800000> : vector<8xf32>
    %47 = vector.multi_reduction <maximumf>, %45, %cst_28 [1] : vector<8x128xf32> to vector<8xf32>
    %48 = vector.shape_cast %47 : vector<8xf32> to vector<8x1xf32>
    %49 = vector.broadcast %48 : vector<8x1xf32> to vector<8x128xf32>
    %50 = arith.subf %45, %49 : vector<8x128xf32>
    %51 = math.exp %50 : vector<8x128xf32>
    %cst_29 = arith.constant dense<0.000000e+00> : vector<8xf32>
    %52 = vector.multi_reduction <add>, %51, %cst_29 [1] : vector<8x128xf32> to vector<8xf32>
    %53 = vector.shape_cast %52 : vector<8xf32> to vector<8x1xf32>
    %54 = vector.broadcast %53 : vector<8x1xf32> to vector<8x128xf32>
    %55 = arith.divf %51, %54 : vector<8x128xf32>
    %56 = math.exp %32 : vector<8x1xf32>
    %57 = vector.broadcast %56 : vector<8x1xf32> to vector<8x128xf32>
    %58 = arith.mulf %57, %55 : vector<8x128xf32>
    %c0_30 = arith.constant 0 : index
    %c0_31 = arith.constant 0 : index
    %59 = vector.load %arg12[%c0_30, %c0_31] : memref<8x128xf32, #tpu.memory_space<vmem>>, vector<8x128xf32>
    tpu.vector_store %arg12[%c0_30, %c0_31], %55 {strides = array<i32>} : memref<8x128xf32, #tpu.memory_space<vmem>>, vector<8x128xf32>,
    %c0_32 = arith.constant 0 : index
    %c0_33 = arith.constant 0 : index
    %60 = vector.load %arg13[%c0_32, %c0_33] : memref<8x128xf32, #tpu.memory_space<vmem>>, vector<8x128xf32>
    tpu.vector_store %arg13[%c0_32, %c0_33], %58 {strides = array<i32>} : memref<8x128xf32, #tpu.memory_space<vmem>>, vector<8x128xf32>,
    %c0_34 = arith.constant 0 : index
    %c0_35 = arith.constant 0 : index
    %61 = vector.load %arg14[%c0_34, %c0_35] : memref<8x128xf32, #tpu.memory_space<vmem>>, vector<8x128xf32>
    tpu.vector_store %arg14[%c0_34, %c0_35], %46 {strides = array<i32>} : memref<8x128xf32, #tpu.memory_space<vmem>>, vector<8x128xf32>,
    %cst_36 = arith.constant 0.000000e+00 : f32
    %62 = vector.broadcast %cst_36 : f32 to vector<8x128xf32>
    %c0_37 = arith.constant 0 : index
    %c0_38 = arith.constant 0 : index
    %63 = vector.load %arg15[%c0_37, %c0_38] : memref<8x128xf32, #tpu.memory_space<vmem>>, vector<8x128xf32>
    tpu.vector_store %arg15[%c0_37, %c0_38], %62 {strides = array<i32>} : memref<8x128xf32, #tpu.memory_space<vmem>>, vector<8x128xf32>,
    %c0_39 = arith.constant 0 : index
    %c0_40 = arith.constant 0 : index
    %64 = vector.load %arg15[%c0_39, %c0_40] : memref<8x128xf32, #tpu.memory_space<vmem>>, vector<8x10xf32>
    tpu.vector_store %arg15[%c0_39, %c0_40], %15 {strides = array<i32>} : memref<8x128xf32, #tpu.memory_space<vmem>>, vector<8x10xf32>,
    %c0_41 = arith.constant 0 : index
    %c10 = arith.constant 10 : index
    %65 = vector.load %arg15[%c0_41, %c10] : memref<8x128xf32, #tpu.memory_space<vmem>>, vector<8x10xf32>
    tpu.vector_store %arg15[%c0_41, %c10], %19 {strides = array<i32>} : memref<8x128xf32, #tpu.memory_space<vmem>>, vector<8x10xf32>,
    %c0_42 = arith.constant 0 : index
    %c20 = arith.constant 20 : index
    %66 = vector.load %arg15[%c0_42, %c20] : memref<8x128xf32, #tpu.memory_space<vmem>>, vector<8x10xf32>
    tpu.vector_store %arg15[%c0_42, %c20], %28 {strides = array<i32>} : memref<8x128xf32, #tpu.memory_space<vmem>>, vector<8x10xf32>,
    %c0_43 = arith.constant 0 : index
    %c30 = arith.constant 30 : index
    %67 = vector.load %arg15[%c0_43, %c30] : memref<8x128xf32, #tpu.memory_space<vmem>>, vector<8x1xf32>
    tpu.vector_store %arg15[%c0_43, %c30], %20 {strides = array<i32>} : memref<8x128xf32, #tpu.memory_space<vmem>>, vector<8x1xf32>,
    %c0_44 = arith.constant 0 : index
    %c31 = arith.constant 31 : index
    %68 = vector.load %arg15[%c0_44, %c31] : memref<8x128xf32, #tpu.memory_space<vmem>>, vector<8x1xf32>
    tpu.vector_store %arg15[%c0_44, %c31], %24 {strides = array<i32>} : memref<8x128xf32, #tpu.memory_space<vmem>>, vector<8x1xf32>,
    %c0_45 = arith.constant 0 : index
    %c32 = arith.constant 32 : index
    %69 = vector.load %arg15[%c0_45, %c32] : memref<8x128xf32, #tpu.memory_space<vmem>>, vector<8x1xf32>
    tpu.vector_store %arg15[%c0_45, %c32], %32 {strides = array<i32>} : memref<8x128xf32, #tpu.memory_space<vmem>>, vector<8x1xf32>,
    return
  }
  func.func @transform_0(%arg0: i32) -> (i32, i32) {
    %c0_i32 = arith.constant 0 : i32
    %c0_i32_0 = arith.constant 0 : i32
    return %arg0, %c0_i32 : i32, i32
  }
  func.func @transform_1(%arg0: i32) -> (i32, i32) {
    %c0_i32 = arith.constant 0 : i32
    %c0_i32_0 = arith.constant 0 : i32
    return %arg0, %c0_i32 : i32, i32
  }
  func.func @transform_2(%arg0: i32) -> (i32, i32) {
    %c0_i32 = arith.constant 0 : i32
    %c0_i32_0 = arith.constant 0 : i32
    return %arg0, %c0_i32 : i32, i32
  }
  func.func @transform_3(%arg0: i32) -> (i32, i32) {
    %c0_i32 = arith.constant 0 : i32
    %c0_i32_0 = arith.constant 0 : i32
    return %arg0, %c0_i32 : i32, i32
  }
  func.func @transform_4(%arg0: i32) -> (i32, i32) {
    %c0_i32 = arith.constant 0 : i32
    %c0_i32_0 = arith.constant 0 : i32
    return %arg0, %c0_i32 : i32, i32
  }
  func.func @transform_5(%arg0: i32) -> (i32, i32) {
    %c0_i32 = arith.constant 0 : i32
    %c0_i32_0 = arith.constant 0 : i32
    %c0_i32_1 = arith.constant 0 : i32
    return %c0_i32, %c0_i32_0 : i32, i32
  }
  func.func @transform_6(%arg0: i32) -> (i32, i32) {
    %c0_i32 = arith.constant 0 : i32
    %c0_i32_0 = arith.constant 0 : i32
    %c0_i32_1 = arith.constant 0 : i32
    return %c0_i32, %c0_i32_0 : i32, i32
  }
  func.func @transform_7(%arg0: i32) -> (i32, i32) {
    %c0_i32 = arith.constant 0 : i32
    %c0_i32_0 = arith.constant 0 : i32
    %c0_i32_1 = arith.constant 0 : i32
    return %c0_i32, %c0_i32_0 : i32, i32
  }
  func.func @transform_8(%arg0: i32) -> (i32, i32) {
    %c0_i32 = arith.constant 0 : i32
    %c0_i32_0 = arith.constant 0 : i32
    %c0_i32_1 = arith.constant 0 : i32
    return %c0_i32, %c0_i32_0 : i32, i32
  }
  func.func @transform_9(%arg0: i32) -> (i32, i32) {
    %c0_i32 = arith.constant 0 : i32
    %c0_i32_0 = arith.constant 0 : i32
    %c0_i32_1 = arith.constant 0 : i32
    return %c0_i32, %c0_i32_0 : i32, i32
  }
  func.func @transform_10(%arg0: i32) -> (i32, i32) {
    %c0_i32 = arith.constant 0 : i32
    %c0_i32_0 = arith.constant 0 : i32
    %c0_i32_1 = arith.constant 0 : i32
    return %c0_i32, %c0_i32_0 : i32, i32
  }
  func.func @transform_11(%arg0: i32) -> (i32, i32) {
    %c0_i32 = arith.constant 0 : i32
    %c0_i32_0 = arith.constant 0 : i32
    return %arg0, %c0_i32 : i32, i32
  }
  func.func @transform_12(%arg0: i32) -> (i32, i32) {
    %c0_i32 = arith.constant 0 : i32
    %c0_i32_0 = arith.constant 0 : i32
    return %arg0, %c0_i32 : i32, i32
  }
  func.func @transform_13(%arg0: i32) -> (i32, i32) {
    %c0_i32 = arith.constant 0 : i32
    %c0_i32_0 = arith.constant 0 : i32
    return %arg0, %c0_i32 : i32, i32
  }
  func.func @transform_14(%arg0: i32) -> (i32, i32) {
    %c0_i32 = arith.constant 0 : i32
    %c0_i32_0 = arith.constant 0 : i32
    return %arg0, %c0_i32 : i32, i32
  }
}

</mosaic_0001>

<llo_original>
// kernel: tpu_custom_call.1
$region0: #{tpu_custom_call.1}
  #allocation0 [shape = 'u32[]', space=smem, size = 0x4, offset = 0x4, fixed_abs, tag = 'smem constant byte address 0x4 - core index']
  #allocation1 [shape = 'u32[144,128]{1,0:T(1,128)}', space=vmem, size = 0x12000, scoped, tag = 'internal scratch']
  %s0 = inlined_call_operand.vmem [shape: bf16[8,128], index: 0, kind: input, shape index: {}]
  %s1 = inlined_call_operand.vmem [shape: f32[8,64], index: 1, kind: input, shape index: {}]
  %s2 = inlined_call_operand.vmem [shape: f32[8,32], index: 2, kind: input, shape index: {}]
  %s3 = inlined_call_operand.vmem [shape: f32[8,10], index: 3, kind: input, shape index: {}]
  %s4 = inlined_call_operand.vmem [shape: f32[8,1], index: 4, kind: input, shape index: {}]
  %s5 = inlined_call_operand.vmem [shape: bf16[128,64], index: 5, kind: input, shape index: {}]
  %s6 = inlined_call_operand.vmem [shape: f32[64,22], index: 6, kind: input, shape index: {}]
  %s7 = inlined_call_operand.vmem [shape: f32[1,22], index: 7, kind: input, shape index: {}]
  %s8 = inlined_call_operand.vmem [shape: f32[10,32], index: 8, kind: input, shape index: {}]
  %s9 = inlined_call_operand.vmem [shape: bf16[32,256], index: 9, kind: input, shape index: {}]
  %s10 = inlined_call_operand.vmem [shape: f32[1,256], index: 10, kind: input, shape index: {}]
  %s11 = inlined_call_operand.hbm [shape: f32[8,128], index: 11, kind: output, shape index: {0}]
  %s12 = inlined_call_operand.hbm [shape: f32[8,128], index: 12, kind: output, shape index: {1}]
  %s13 = inlined_call_operand.hbm [shape: f32[8,128], index: 13, kind: output, shape index: {2}]
  %s14 = inlined_call_operand.hbm [shape: f32[8,128], index: 14, kind: output, shape index: {3}]
  %15 = xla_tuple %s11, %s12, %s13, %s14
  %s16 = sld [smem:[#allocation0]]
  $region78: #{tpu_custom_call.1} parent=0
    _
  %s18 = ssub.s32 1, %s16
  %s19 = scalar_select 0, %s18, %s16
  $region1: #{tpu_custom_call.1} parent=0
    #allocation2 [shape = 'u8[4096]{0}', space=vmem, size = 0x1000, scoped, tag = 'output window, operand 0, single buffered']
    #allocation3 [shape = 's32[1]{0}', space=sflag, size = 0x4, scoped, tag = 'scoped memory for tpu_custom_call.1']
    #allocation4 [shape = 'u8[4096]{0}', space=vmem, size = 0x1000, scoped, tag = 'output window, operand 1, single buffered']
    #allocation5 [shape = 's32[1]{0}', space=sflag, size = 0x4, scoped, tag = 'scoped memory for tpu_custom_call.1']
    #allocation6 [shape = 'u8[4096]{0}', space=vmem, size = 0x1000, scoped, tag = 'output window, operand 2, single buffered']
    #allocation7 [shape = 'u8[4096]{0}', space=vmem, size = 0x1000, scoped, tag = 'output window, operand 3, single buffered']
    #allocation8 [shape = 's32[1]{0}', space=sflag, size = 0x4, scoped, tag = 'scoped memory for tpu_custom_call.1']
    %20 = vsyncpa [#allocation3], 0
    %21 = vsyncpa [#allocation5], 0
    %22 = vsyncpa [#allocation8], 0
    // Predicated region
    $region2: #{tpu_custom_call.1} parent=1 // pred_check
      _
    $region3: #{tpu_custom_call.1} parent=1 // pred_check_branch
      %24 = sbr.rel (0) target = $region5
    $region4: #{tpu_custom_call.1} parent=1 // pred_region
      _
    $region5: #{tpu_custom_call.1} parent=1 // pred_fallthru
      _
    // Predicated region
    $region6: #{tpu_custom_call.1} parent=1 // pred_check
      _
    $region7: #{tpu_custom_call.1} parent=1 // pred_check_branch
      %26 = sbr.rel (0) target = $region9
    $region8: #{tpu_custom_call.1} parent=1 // pred_region
      _
    $region9: #{tpu_custom_call.1} parent=1 // pred_fallthru
      _
    // Predicated region
    $region10: #{tpu_custom_call.1} parent=1 // pred_check
      _
    $region11: #{tpu_custom_call.1} parent=1 // pred_check_branch
      %28 = sbr.rel (0) target = $region13
    $region12: #{tpu_custom_call.1} parent=1 // pred_region
      _
    $region13: #{tpu_custom_call.1} parent=1 // pred_fallthru
      _
    // Predicated region
    $region14: #{tpu_custom_call.1} parent=1 // pred_check
      _
    $region15: #{tpu_custom_call.1} parent=1 // pred_check_branch
      %30 = sbr.rel (0) target = $region17
    $region16: #{tpu_custom_call.1} parent=1 // pred_region
      _
    $region17: #{tpu_custom_call.1} parent=1 // pred_fallthru
      _
    // Predicated region
    $region18: #{tpu_custom_call.1} parent=1 // pred_check
      _
    $region19: #{tpu_custom_call.1} parent=1 // pred_check_branch
      %32 = sbr.rel (0) target = $region21
    $region20: #{tpu_custom_call.1} parent=1 // pred_region
      _
    $region21: #{tpu_custom_call.1} parent=1 // pred_fallthru
      _
    // Predicated region
    $region22: #{tpu_custom_call.1} parent=1 // pred_check
      _
    $region23: #{tpu_custom_call.1} parent=1 // pred_check_branch
      %34 = sbr.rel (0) target = $region25
    $region24: #{tpu_custom_call.1} parent=1 // pred_region
      _
    $region25: #{tpu_custom_call.1} parent=1 // pred_fallthru
      _
    // Predicated region
    $region26: #{tpu_custom_call.1} parent=1 // pred_check
      _
    $region27: #{tpu_custom_call.1} parent=1 // pred_check_branch
      %36 = sbr.rel (0) target = $region29
    $region28: #{tpu_custom_call.1} parent=1 // pred_region
      _
    $region29: #{tpu_custom_call.1} parent=1 // pred_fallthru
      _
    // Predicated region
    $region30: #{tpu_custom_call.1} parent=1 // pred_check
      _
    $region31: #{tpu_custom_call.1} parent=1 // pred_check_branch
      %38 = sbr.rel (0) target = $region33
    $region32: #{tpu_custom_call.1} parent=1 // pred_region
      _
    $region33: #{tpu_custom_call.1} parent=1 // pred_fallthru
      _
    // Predicated region
    $region34: #{tpu_custom_call.1} parent=1 // pred_check
      _
    $region35: #{tpu_custom_call.1} parent=1 // pred_check_branch
      %40 = sbr.rel (0) target = $region37
    $region36: #{tpu_custom_call.1} parent=1 // pred_region
      _
    $region37: #{tpu_custom_call.1} parent=1 // pred_fallthru
      _
    // Predicated region
    $region38: #{tpu_custom_call.1} parent=1 // pred_check
      _
    $region39: #{tpu_custom_call.1} parent=1 // pred_check_branch
      %42 = sbr.rel (0) target = $region41
    $region40: #{tpu_custom_call.1} parent=1 // pred_region
      _
    $region41: #{tpu_custom_call.1} parent=1 // pred_fallthru
      _
    // Predicated region
    $region42: #{tpu_custom_call.1} parent=1 // pred_check
      _
    $region43: #{tpu_custom_call.1} parent=1 // pred_check_branch
      %44 = sbr.rel (0) target = $region45
    $region44: #{tpu_custom_call.1} parent=1 // pred_region
      _
    $region45: #{tpu_custom_call.1} parent=1 // pred_fallthru
      _
    %v46 = vld [vmem:[%s0] sm:$0xf]
    %v47 = vunpack.c.l.bf16 %v46
    %v48 = vadd.f32 %v47, 1.0
    %v49 = vlog2.pop %v48
    %v50 = vmul.f32 %v49, 0.6931472
    %v51 = vmul.f32 -0.5, %v47
    %v52 = vadd.f32 %v51, 1.0
    %v53 = vmul.f32 %v52, %v47
    %v54 = vand.u32 2147483647, %v47
    %vm55 = vcmp.lt.f32.partialorder %v54, 0.0004427343
    %v56 = vsel %vm55, %v53, %v50
    %v57 = vpack.c.bf16 %v56, %v56
    %v58 = vld [vmem:[%s5] sm:$0xf]
    %v59 = vld [vmem:[%s5 + $0x4] sm:$0xf]
    %v60 = vld [vmem:[%s5 + $0x8] sm:$0xf]
    %v61 = vld [vmem:[%s5 + $0xc] sm:$0xf]
    %v62 = vld [vmem:[%s5 + $0x10] sm:$0xf]
    %v63 = vld [vmem:[%s5 + $0x14] sm:$0xf]
    %v64 = vld [vmem:[%s5 + $0x18] sm:$0xf]
    %v65 = vld [vmem:[%s5 + $0x1c] sm:$0xf]
    %v66 = vld [vmem:[%s5 + $0x20] sm:$0xf]
    %v67 = vld [vmem:[%s5 + $0x24] sm:$0xf]
    %v68 = vld [vmem:[%s5 + $0x28] sm:$0xf]
    %v69 = vld [vmem:[%s5 + $0x2c] sm:$0xf]
    %v70 = vld [vmem:[%s5 + $0x30] sm:$0xf]
    %v71 = vld [vmem:[%s5 + $0x34] sm:$0xf]
    %v72 = vld [vmem:[%s5 + $0x38] sm:$0xf]
    %v73 = vld [vmem:[%s5 + $0x3c] sm:$0xf]
    %v74 = vld [vmem:[%s1] sm:$0xff]
    %v91 = vunpack.c.l.b16 %v58
    %v92 = vunpack.c.l.b16 %v59
    %v93 = vunpack.c.l.b16 %v60
    %v94 = vunpack.c.l.b16 %v61
    %v95 = vunpack.c.l.b16 %v62
    %v96 = vunpack.c.l.b16 %v63
    %v97 = vunpack.c.l.b16 %v64
    %v98 = vunpack.c.l.b16 %v65
    %v99 = vunpack.c.l.b16 %v66
    %v100 = vunpack.c.l.b16 %v67
    %v101 = vunpack.c.l.b16 %v68
    %v102 = vunpack.c.l.b16 %v69
    %v103 = vunpack.c.l.b16 %v70
    %v104 = vunpack.c.l.b16 %v71
    %v105 = vunpack.c.l.b16 %v72
    %v106 = vunpack.c.l.b16 %v73
    %v107 = vpack.c.b16 %v92, %v91
    %v108 = vpack.c.b16 %v94, %v93
    %v109 = vpack.c.b16 %v96, %v95
    %v110 = vpack.c.b16 %v98, %v97
    %v111 = vpack.c.b16 %v100, %v99
    %v112 = vpack.c.b16 %v102, %v101
    %v113 = vpack.c.b16 %v104, %v103
    %v114 = vpack.c.b16 %v106, %v105
    %123 = vmatprep.subr.bf16.mxu0 0
    %124 = vmatpush1.bf16.msra.mxu0 %v114
    %125 = vmatprep.subr.bf16.mxu0 0
    %126 = vmatpush1.bf16.msra.mxu0 %v113
    %127 = vmatprep.subr.bf16.mxu0 0
    %128 = vmatpush1.bf16.msra.mxu0 %v112
    %129 = vmatprep.subr.bf16.mxu0 0
    %130 = vmatpush1.bf16.msra.mxu0 %v111
    %131 = vmatprep.subr.bf16.mxu0 0
    %132 = vmatpush1.bf16.msra.mxu0 %v110
    %133 = vmatprep.subr.bf16.mxu0 0
    %134 = vmatpush1.bf16.msra.mxu0 %v109
    %135 = vmatprep.subr.bf16.mxu0 0
    %136 = vmatpush1.bf16.msra.mxu0 %v108
    %137 = vmatprep.subr.bf16.mxu0 0
    %138 = vmatpush1.bf16.msra.mxu0 %v107
    %139 = vmatprep.subr.bf16.mxu0 0
    %140 = vmatpush2.bf16.msra.mxu0 0
    %141 = vmatprep.subr.bf16.mxu0 0
    %142 = vmatpush2.bf16.msra.mxu0 0
    %143 = vmatprep.subr.bf16.mxu0 0
    %144 = vmatpush2.bf16.msra.mxu0 0
    %145 = vmatprep.subr.bf16.mxu0 0
    %146 = vmatpush2.bf16.msra.mxu0 0
    %147 = vmatprep.subr.bf16.mxu0 0
    %148 = vmatpush2.bf16.msra.mxu0 0
    %149 = vmatprep.subr.bf16.mxu0 0
    %150 = vmatpush2.bf16.msra.mxu0 0
    %151 = vmatprep.subr.bf16.mxu0 0
    %152 = vmatpush2.bf16.msra.mxu0 0
    %153 = vmatprep.subr.bf16.mxu0 0
    %154 = vmatpush2.bf16.msra.mxu0 0
    %155 = vmatprep.mubr.bf16.mxu0 0
    %156 = vmatmul.mubr.bf16.gmra.mxu0 %v57
    %v157 = vpop.f32.mrf.mxu0
    %v158 = vadd.f32 %v74, %v157
    %v159 = vpop.f32.mrf.mxu0
    %v160 = vpop.f32.mrf.mxu0
    %v161 = vpop.f32.mrf.mxu0
    %162 = vdwg.mxu0
    %v163 = vmax.f32 %v158, 0.0
    %v164 = vld [vmem:[%s6] sm:$0xff]
    %v165 = vld [vmem:[%s6 + $0x8] sm:$0xff]
    %v166 = vld [vmem:[%s6 + $0x10] sm:$0xff]
    %v167 = vld [vmem:[%s6 + $0x18] sm:$0xff]
    %v168 = vld [vmem:[%s6 + $0x20] sm:$0xff]
    %v169 = vld [vmem:[%s6 + $0x28] sm:$0xff]
    %v170 = vld [vmem:[%s6 + $0x30] sm:$0xff]
    %v171 = vld [vmem:[%s6 + $0x38] sm:$0xff]
    %v172 = vld [vmem:[%s7] sm:$0x1]
    %v174 = vlaneseq
    %v175 = vshrl.u32 %v174, 7
    %v176 = vsub.s32 0, %v175
    %v177 = vrot.slane %v172, %v176
    %vm179 = vcmask 523264
    %v181 = vsel %vm179, %v163, 0
    %183 = vmatprep.subr.mxu0 0.0
    %184 = vmatpush1.msra.mxu0 0.0
    %185 = vmatprep.subr.mxu0 0.0
    %186 = vmatpush1.msra.mxu0 0.0
    %187 = vmatprep.subr.mxu0 0.0
    %188 = vmatpush1.msra.mxu0 0.0
    %189 = vmatprep.subr.mxu0 0.0
    %190 = vmatpush1.msra.mxu0 0.0
    %191 = vmatprep.subr.mxu0 0.0
    %192 = vmatpush1.msra.mxu0 0.0
    %193 = vmatprep.subr.mxu0 0.0
    %194 = vmatpush1.msra.mxu0 0.0
    %195 = vmatprep.subr.mxu0 0.0
    %196 = vmatpush1.msra.mxu0 0.0
    %197 = vmatprep.subr.mxu0 0.0
    %198 = vmatpush1.msra.mxu0 0.0
    %199 = vmatprep.subr.mxu0 0.0
    %200 = vmatpush1.msra.mxu0 %v171
    %201 = vmatprep.subr.mxu0 0.0
    %202 = vmatpush1.msra.mxu0 %v170
    %203 = vmatprep.subr.mxu0 0.0
    %204 = vmatpush1.msra.mxu0 %v169
    %205 = vmatprep.subr.mxu0 0.0
    %206 = vmatpush1.msra.mxu0 %v168
    %207 = vmatprep.subr.mxu0 0.0
    %208 = vmatpush1.msra.mxu0 %v167
    %209 = vmatprep.subr.mxu0 0.0
    %210 = vmatpush1.msra.mxu0 %v166
    %211 = vmatprep.subr.mxu0 0.0
    %212 = vmatpush1.msra.mxu0 %v165
    %213 = vmatprep.subr.mxu0 0.0
    %214 = vmatpush1.msra.mxu0 %v164
    %215 = vmatprep.subr.mxu0 0.0
    %216 = vmatpush2.msra.mxu0 0.0
    %217 = vmatprep.subr.mxu0 0.0
    %218 = vmatpush2.msra.mxu0 0.0
    %219 = vmatprep.subr.mxu0 0.0
    %220 = vmatpush2.msra.mxu0 0.0
    %221 = vmatprep.subr.mxu0 0.0
    %222 = vmatpush2.msra.mxu0 0.0
    %223 = vmatprep.subr.mxu0 0.0
    %224 = vmatpush2.msra.mxu0 0.0
    %225 = vmatprep.subr.mxu0 0.0
    %226 = vmatpush2.msra.mxu0 0.0
    %227 = vmatprep.subr.mxu0 0.0
    %228 = vmatpush2.msra.mxu0 0.0
    %229 = vmatprep.subr.mxu0 0.0
    %230 = vmatpush2.msra.mxu0 0.0
    %231 = vmatprep.subr.mxu0 0.0
    %232 = vmatpush2.msra.mxu0 0.0
    %233 = vmatprep.subr.mxu0 0.0
    %234 = vmatpush2.msra.mxu0 0.0
    %235 = vmatprep.subr.mxu0 0.0
    %236 = vmatpush2.msra.mxu0 0.0
    %237 = vmatprep.subr.mxu0 0.0
    %238 = vmatpush2.msra.mxu0 0.0
    %239 = vmatprep.subr.mxu0 0.0
    %240 = vmatpush2.msra.mxu0 0.0
    %241 = vmatprep.subr.mxu0 0.0
    %242 = vmatpush2.msra.mxu0 0.0
    %243 = vmatprep.subr.mxu0 0.0
    %244 = vmatpush2.msra.mxu0 0.0
    %245 = vmatprep.subr.mxu0 0.0
    %246 = vmatpush2.msra.mxu0 0.0
    %247 = vmatprep.mubr.f32.mxu0 0.0
    %248 = vmatmul.mubr.f32.gmra.mxu0 %v181
    %v249 = vpop.f32.mrf.mxu0
    %v250 = vadd.f32 %v177, %v249
    %v251 = vpop.f32.mrf.mxu0
    %252 = vdwg.mxu0
    %v253 = vmul.f32 %v250, 1.442695
    %v254 = vpow.pop %v253
    %v255 = vadd.f32 %v254, 0.0001
    %v256 = vrsqrt.pop %v255
    %v257 = vmul.f32 %v255, %v256
    %vm258 = vcmp.eq.f32.partialorder %v255, inf
    %v259 = vsel %vm258, %v255, %v257
    %vm260 = vcmp.eq.f32.partialorder %v255, 0.0
    %v261 = vand.u32 %v255, 2147483648
    %v262 = vsel %vm260, %v261, %v259
    %v263 = vld [vmem:[%s3] sm:$0xff]
    %265 = vrot.lane.b32.xlu0 %v263, 10
    %v266 = vpop.permute.xlu0 %265
    %v268 = vmul.f32 %v262, %v266
    %270 = vrot.lane.b32.xlu0 %v268, 118
    %v271 = vpop.permute.xlu0 %270
    %v273 = vadd.f32 %v250, %v271
    %v274 = vld [vmem:[%s4] sm:$0xff]
    %276 = vrot.lane.b32.xlu0 %v274, 21
    %v277 = vpop.permute.xlu0 %276
    %v279 = vmul.f32 %v262, %v277
    %281 = vrot.lane.b32.xlu0 %v279, 127
    %v282 = vpop.permute.xlu0 %281
    %v284 = vadd.f32 %v250, %v282
    %v285 = vld [vmem:[%s8] sm:$0xff]
    %v286 = vld [vmem:[%s8 + $0x8] sm:$0x3]
    %v287 = vld [vmem:[%s2] sm:$0xff]
    %vm288 = vcmask 80896
    %v290 = vsel %vm288, %v273, 0
    %vm292 = vcmask 1041408
    %v294 = vsel %vm292, %v286, 0
    %296 = vmatprep.subr.mxu0 0.0
    %297 = vmatpush1.msra.mxu0 0.0
    %298 = vmatprep.subr.mxu0 0.0
    %299 = vmatpush1.msra.mxu0 0.0
    %300 = vmatprep.subr.mxu0 0.0
    %301 = vmatpush1.msra.mxu0 0.0
    %302 = vmatprep.subr.mxu0 0.0
    %303 = vmatpush1.msra.mxu0 0.0
    %304 = vmatprep.subr.mxu0 0.0
    %305 = vmatpush1.msra.mxu0 0.0
    %306 = vmatprep.subr.mxu0 0.0
    %307 = vmatpush1.msra.mxu0 0.0
    %308 = vmatprep.subr.mxu0 0.0
    %309 = vmatpush1.msra.mxu0 0.0
    %310 = vmatprep.subr.mxu0 0.0
    %311 = vmatpush1.msra.mxu0 0.0
    %312 = vmatprep.subr.mxu0 0.0
    %313 = vmatpush1.msra.mxu0 0.0
    %314 = vmatprep.subr.mxu0 0.0
    %315 = vmatpush1.msra.mxu0 0.0
    %316 = vmatprep.subr.mxu0 0.0
    %317 = vmatpush1.msra.mxu0 0.0
    %318 = vmatprep.subr.mxu0 0.0
    %319 = vmatpush1.msra.mxu0 0.0
    %320 = vmatprep.subr.mxu0 0.0
    %321 = vmatpush1.msra.mxu0 0.0
    %322 = vmatprep.subr.mxu0 0.0
    %323 = vmatpush1.msra.mxu0 0.0
    %324 = vmatprep.subr.mxu0 0.0
    %325 = vmatpush1.msra.mxu0 %v294
    %326 = vmatprep.subr.mxu0 0.0
    %327 = vmatpush1.msra.mxu0 %v285
    %328 = vmatprep.subr.mxu0 0.0
    %329 = vmatpush2.msra.mxu0 0.0
    %330 = vmatprep.subr.mxu0 0.0
    %331 = vmatpush2.msra.mxu0 0.0
    %332 = vmatprep.subr.mxu0 0.0
    %333 = vmatpush2.msra.mxu0 0.0
    %334 = vmatprep.subr.mxu0 0.0
    %335 = vmatpush2.msra.mxu0 0.0
    %336 = vmatprep.subr.mxu0 0.0
    %337 = vmatpush2.msra.mxu0 0.0
    %338 = vmatprep.subr.mxu0 0.0
    %339 = vmatpush2.msra.mxu0 0.0
    %340 = vmatprep.subr.mxu0 0.0
    %341 = vmatpush2.msra.mxu0 0.0
    %342 = vmatprep.subr.mxu0 0.0
    %343 = vmatpush2.msra.mxu0 0.0
    %344 = vmatprep.subr.mxu0 0.0
    %345 = vmatpush2.msra.mxu0 0.0
    %346 = vmatprep.subr.mxu0 0.0
    %347 = vmatpush2.msra.mxu0 0.0
    %348 = vmatprep.subr.mxu0 0.0
    %349 = vmatpush2.msra.mxu0 0.0
    %350 = vmatprep.subr.mxu0 0.0
    %351 = vmatpush2.msra.mxu0 0.0
    %352 = vmatprep.subr.mxu0 0.0
    %353 = vmatpush2.msra.mxu0 0.0
    %354 = vmatprep.subr.mxu0 0.0
    %355 = vmatpush2.msra.mxu0 0.0
    %356 = vmatprep.subr.mxu0 0.0
    %357 = vmatpush2.msra.mxu0 0.0
    %358 = vmatprep.subr.mxu0 0.0
    %359 = vmatpush2.msra.mxu0 0.0
    %360 = vmatprep.mubr.f32.mxu0 0.0
    %361 = vmatmul.mubr.f32.gmra.mxu0 %v290
    %v362 = vpop.f32.mrf.mxu0
    %v363 = vadd.f32 %v287, %v362
    %v364 = vpop.f32.mrf.mxu0
    %365 = vdwg.mxu0
    %v366 = vmax.f32 %v363, 0.0
    %v367 = vpack.c.bf16 %v366, %v366
    %v368 = vld [vmem:[%s9] sm:$0xff]
    %v369 = vld [vmem:[%s9 + $0x8] sm:$0xff]
    %v370 = vld [vmem:[%s9 + $0x10] sm:$0xff]
    %v371 = vld [vmem:[%s9 + $0x18] sm:$0xff]
    %v372 = vld [vmem:[%s10] sm:$0x3]
    %v374 = vlaneseq
    %v375 = vshrl.u32 %v374, 7
    %v376 = vsub.s32 0, %v375
    %v377 = vrot.slane %v372, %v376
    %v378 = vlaneseq
    %v379 = vshrl.u32 %v378, 7
    %v380 = vsub.s32 1, %v379
    %v381 = vrot.slane %v372, %v380
    %v388 = vunpack.c.l.b16 %v368
    %v389 = vunpack.c.h.b16 %v368
    %v390 = vunpack.c.l.b16 %v369
    %v391 = vunpack.c.h.b16 %v369
    %v392 = vunpack.c.l.b16 %v370
    %v393 = vunpack.c.h.b16 %v370
    %v394 = vunpack.c.l.b16 %v371
    %v395 = vunpack.c.h.b16 %v371
    %v396 = vpack.c.b16 %v390, %v388
    %v397 = vpack.c.b16 %v391, %v389
    %v398 = vpack.c.b16 %v394, %v392
    %v399 = vpack.c.b16 %v395, %v393
    %vm404 = vcmask 261120
    %v406 = vsel %vm404, %v367, 0
    %408 = vmatprep.subr.bf16.mxu0 0
    %409 = vmatpush1.bf16.msra.mxu0 0
    %410 = vmatprep.subr.bf16.mxu0 0
    %411 = vmatpush1.bf16.msra.mxu0 0
    %412 = vmatprep.subr.bf16.mxu0 0
    %413 = vmatpush1.bf16.msra.mxu0 0
    %414 = vmatprep.subr.bf16.mxu0 0
    %415 = vmatpush1.bf16.msra.mxu0 0
    %416 = vmatprep.subr.bf16.mxu0 0
    %417 = vmatpush1.bf16.msra.mxu0 0
    %418 = vmatprep.subr.bf16.mxu0 0
    %419 = vmatpush1.bf16.msra.mxu0 0
    %420 = vmatprep.subr.bf16.mxu0 %v399
    %421 = vmatpush1.bf16.msra.mxu0 %v398
    %422 = vmatprep.subr.bf16.mxu0 %v397
    %423 = vmatpush1.bf16.msra.mxu0 %v396
    %424 = vmatprep.subr.bf16.mxu0 0
    %425 = vmatpush2.bf16.msra.mxu0 0
    %426 = vmatprep.subr.bf16.mxu0 0
    %427 = vmatpush2.bf16.msra.mxu0 0
    %428 = vmatprep.subr.bf16.mxu0 0
    %429 = vmatpush2.bf16.msra.mxu0 0
    %430 = vmatprep.subr.bf16.mxu0 0
    %431 = vmatpush2.bf16.msra.mxu0 0
    %432 = vmatprep.subr.bf16.mxu0 0
    %433 = vmatpush2.bf16.msra.mxu0 0
    %434 = vmatprep.subr.bf16.mxu0 0
    %435 = vmatpush2.bf16.msra.mxu0 0
    %436 = vmatprep.subr.bf16.mxu0 0
    %437 = vmatpush2.bf16.msra.mxu0 0
    %438 = vmatprep.subr.bf16.mxu0 0
    %439 = vmatpush2.bf16.msra.mxu0 0
    %440 = vmatprep.mubr.bf16.mxu0 0
    %441 = vmatmul.mubr.bf16.gmra.mxu0 %v406
    %v442 = vpop.f32.mrf.mxu0
    %v443 = vadd.f32 %v377, %v442
    %v444 = vpop.f32.mrf.mxu0
    %v445 = vadd.f32 %v381, %v444
    %v446 = vpop.f32.mrf.mxu0
    %v447 = vpop.f32.mrf.mxu0
    %448 = vdwg.mxu0
    %449 = vmax.xlane.f32.xlu0 %v443
    %v450 = vpop.xlane.xlu0 %449
    %v451 = vsub.f32 %v443, %v450
    %v452 = vmul.f32 %v451, 1.442695
    %v453 = vpow.pop %v452
    %454 = vadd.xlane.f32.xlu0 %v453
    %v455 = vpop.xlane.xlu0 %454
    %v456 = vrcp.pop %v455
    %v457 = vmul.f32 %v453, %v456
    %v458 = vmul.f32 %v284, 1.442695
    %v459 = vpow.pop %v458
    %461 = vset.pattern.permute.xlu0 20
    %462 = vperm.xlu0 %461, %v459
    %v463 = vpop.permute.xlu0 %462
    %v465 = vmul.f32 %v463, %v457
    %466 = vst [vmem:[#allocation2] sm:$0xff] %v457
    %467 = vst [vmem:[#allocation4] sm:$0xff] %v465
    %468 = vst [vmem:[#allocation6] sm:$0xff] %v445
    %469 = vst [vmem:[#allocation7] sm:$0xff] 0.0
    %470 = vst.msk [vmem:[#allocation7] sm:$0xff] %vm288, %v250
    %vm471 = vcmask 162896
    %472 = vst.msk [vmem:[#allocation7] sm:$0xff] %vm471, %v255
    %473 = vrot.lane.b32.xlu0 %v273, 20
    %v474 = vpop.permute.xlu0 %473
    %vm476 = vcmask 244896
    %477 = vst.msk [vmem:[#allocation7] sm:$0xff] %vm476, %v474
    %479 = vrot.lane.b32.xlu0 %v250, 10
    %v480 = vpop.permute.xlu0 %479
    %vm482 = vcmask 253168
    %483 = vst.msk [vmem:[#allocation7] sm:$0xff] %vm482, %v480
    %485 = vrot.lane.b32.xlu0 %v255, 10
    %v486 = vpop.permute.xlu0 %485
    %vm488 = vcmask 261368
    %489 = vst.msk [vmem:[#allocation7] sm:$0xff] %vm488, %v486
    %491 = vrot.lane.b32.xlu0 %v284, 12
    %v492 = vpop.permute.xlu0 %491
    %vm494 = vcmask 269568
    %495 = vst.msk [vmem:[#allocation7] sm:$0xff] %vm494, %v492
    // Predicated region
    $region46: #{tpu_custom_call.1} parent=1 // pred_check
      _
    $region47: #{tpu_custom_call.1} parent=1 // pred_check_branch
      %497 = sbr.rel (0) target = $region49
    $region48: #{tpu_custom_call.1} parent=1 // pred_region
      %s499 = ssub.s32 128, 128
      %500 = vsyncadd [#allocation3], %s499
      %s502 = sshll.u32 [#allocation2], 4
      %s503 = int_to_ptr.vmem [resolvable:$true] %s502
      %505 = dma.vmem_to_hbm [thread:$0]  %s503, 128, %s11, [#allocation3]
    $region49: #{tpu_custom_call.1} parent=1 // pred_fallthru
      _
    // Predicated region
    $region50: #{tpu_custom_call.1} parent=1 // pred_check
      _
    $region51: #{tpu_custom_call.1} parent=1 // pred_check_branch
      %507 = sbr.rel (0) target = $region53
    $region52: #{tpu_custom_call.1} parent=1 // pred_region
      %s509 = ssub.s32 128, 128
      %510 = vsyncadd [#allocation5], %s509
      %s512 = sshll.u32 [#allocation4], 4
      %s513 = int_to_ptr.vmem [resolvable:$true] %s512
      %515 = dma.vmem_to_hbm [thread:$0]  %s513, 128, %s12, [#allocation5]
    $region53: #{tpu_custom_call.1} parent=1 // pred_fallthru
      _
    // Predicated region
    $region54: #{tpu_custom_call.1} parent=1 // pred_check
      _
    $region55: #{tpu_custom_call.1} parent=1 // pred_check_branch
      %517 = sbr.rel (0) target = $region57
    $region56: #{tpu_custom_call.1} parent=1 // pred_region
      %s519 = ssub.s32 128, 128
      %520 = vsyncadd [#allocation5], %s519
      %s522 = sshll.u32 [#allocation6], 4
      %s523 = int_to_ptr.vmem [resolvable:$true] %s522
      %525 = dma.vmem_to_hbm [thread:$0]  %s523, 128, %s13, [#allocation5]
    $region57: #{tpu_custom_call.1} parent=1 // pred_fallthru
      _
    // Predicated region
    $region58: #{tpu_custom_call.1} parent=1 // pred_check
      _
    $region59: #{tpu_custom_call.1} parent=1 // pred_check_branch
      %527 = sbr.rel (0) target = $region61
    $region60: #{tpu_custom_call.1} parent=1 // pred_region
      %s529 = ssub.s32 128, 128
      %530 = vsyncadd [#allocation8], %s529
      %s532 = sshll.u32 [#allocation7], 4
      %s533 = int_to_ptr.vmem [resolvable:$true] %s532
      %535 = dma.vmem_to_hbm [thread:$0]  %s533, 128, %s14, [#allocation8]
    $region61: #{tpu_custom_call.1} parent=1 // pred_fallthru
      _
    // Predicated region
    $region62: #{tpu_custom_call.1} parent=1 // pred_check
      _
    $region63: #{tpu_custom_call.1} parent=1 // pred_check_branch
      %537 = sbr.rel (0) target = $region65
    $region64: #{tpu_custom_call.1} parent=1 // pred_region
      %538 = dma.done [#allocation3], 128
    $region65: #{tpu_custom_call.1} parent=1 // pred_fallthru
      _
    // Predicated region
    $region66: #{tpu_custom_call.1} parent=1 // pred_check
      _
    $region67: #{tpu_custom_call.1} parent=1 // pred_check_branch
      %540 = sbr.rel (0) target = $region69
    $region68: #{tpu_custom_call.1} parent=1 // pred_region
      %541 = dma.done [#allocation5], 128
    $region69: #{tpu_custom_call.1} parent=1 // pred_fallthru
      _
    // Predicated region
    $region70: #{tpu_custom_call.1} parent=1 // pred_check
      _
    $region71: #{tpu_custom_call.1} parent=1 // pred_check_branch
      %543 = sbr.rel (0) target = $region73
    $region72: #{tpu_custom_call.1} parent=1 // pred_region
      %544 = dma.done [#allocation5], 128
    $region73: #{tpu_custom_call.1} parent=1 // pred_fallthru
      _
    // Predicated region
    $region74: #{tpu_custom_call.1} parent=1 // pred_check
      _
    $region75: #{tpu_custom_call.1} parent=1 // pred_check_branch
      %546 = sbr.rel (0) target = $region77
    $region76: #{tpu_custom_call.1} parent=1 // pred_region
      %547 = dma.done [#allocation8], 128
    $region77: #{tpu_custom_call.1} parent=1 // pred_fallthru
      _
    %548 = vsyncpa [#allocation3], 1
    %549 = vsyncpa [#allocation5], 1
    %550 = vsyncpa [#allocation8], 1

</llo_original>
